<compile_context>
chip_gen: v6e
topology: v6e:2x2x1
jax: 0.10.0
libtpu: 0.0.40
codegen_flags: <defaults>
</compile_context>

<pallas_src>
import math
import numpy as np
import jax
import jax.numpy as jnp
from jax.experimental import pallas as pl
from jax.experimental.pallas import tpu as pltpu


# ----------------------------------------------------------------------------
# helpers
# ----------------------------------------------------------------------------
def _round_up(x, m):
    return ((x + m - 1) // m) * m


def _pick_tile(dim, target, align):
    """Largest multiple of `align` that divides `dim` and is <= target; else full dim."""
    if dim <= target:
        return dim
    t = (target // align) * align
    while t >= align:
        if dim % t == 0:
            return t
        t -= align
    return dim  # full dim is always a legal block


def _pick_batch(bf, rows_per_item, target_rows=512, max_rows=2048):
    """Smallest divisor of bf whose block reaches ~target_rows rows (capped)."""
    best = 1
    for d in range(1, bf + 1):
        if bf % d == 0 and d * rows_per_item <= max_rows:
            best = d
            if d * rows_per_item >= target_rows:
                break
    return best


# ----------------------------------------------------------------------------
# Tiled matmul kernel: out = x @ w [+ b] [act] [+ residual]   (bf16 MXU, f32 accum)
# ----------------------------------------------------------------------------
def _matmul_kernel(has_bias, has_res, act):
    def kernel(*refs):
        x_ref, w_ref = refs[0], refs[1]
        pos = 2
        b_ref = res_ref = None
        if has_bias:
            b_ref = refs[pos]; pos += 1
        if has_res:
            res_ref = refs[pos]; pos += 1
        o_ref = refs[pos]
        acc_ref = refs[pos + 1]

        @pl.when(pl.program_id(2) == 0)
        def _init():
            acc_ref[...] = jnp.zeros_like(acc_ref)

        acc_ref[...] += jnp.dot(x_ref[...].astype(jnp.bfloat16),
                                w_ref[...].astype(jnp.bfloat16),
                                preferred_element_type=jnp.float32)

        @pl.when(pl.program_id(2) == pl.num_programs(2) - 1)
        def _finalize():
            y = acc_ref[...]
            if has_bias:
                y = y + b_ref[...].astype(jnp.float32)
            if act == "quick_gelu":
                y = y * jax.nn.sigmoid(1.702 * y)
            if has_res:
                y = y + res_ref[...].astype(jnp.float32)
            o_ref[...] = y.astype(o_ref.dtype)

    return kernel


def matmul(x, w, b=None, residual=None, act=None, tm=256, tn=512, tk=1024,
           out_dtype=jnp.bfloat16):
    """x: (M, K) @ w: (K, N) [+ b (N,)] [act] [+ residual (M, N)] -> (M, N)."""
    M, K = x.shape
    N = w.shape[1]
    has_bias = b is not None
    has_res = residual is not None
    # residual fusion is only valid without an activation in this model
    assert not (has_res and act is not None), "residual+activation fusion unsupported"

    TM = _pick_tile(M, tm, 16)        # bf16 sublane tile = 16
    TN = _pick_tile(N, tn, 128)
    TK = _pick_tile(K, tk, 128)
    gm, gn, gk = M // TM, N // TN, K // TK

    in_specs = [pl.BlockSpec((TM, TK), lambda i, j, k: (i, k)),
                pl.BlockSpec((TK, TN), lambda i, j, k: (k, j))]
    args = [x, w]
    if has_bias:
        in_specs.append(pl.BlockSpec((1, TN), lambda i, j, k: (0, j)))
        args.append(b.reshape(1, N))
    if has_res:
        in_specs.append(pl.BlockSpec((TM, TN), lambda i, j, k: (i, j)))
        args.append(residual)

    return pl.pallas_call(
        _matmul_kernel(has_bias, has_res, act),
        out_shape=jax.ShapeDtypeStruct((M, N), out_dtype),
        grid_spec=pltpu.PrefetchScalarGridSpec(
            num_scalar_prefetch=0, grid=(gm, gn, gk),
            in_specs=in_specs,
            out_specs=pl.BlockSpec((TM, TN), lambda i, j, k: (i, j)),
            scratch_shapes=[pltpu.VMEM((TM, TN), jnp.float32)]),
        compiler_params=pltpu.CompilerParams(
            dimension_semantics=("parallel", "parallel", "arbitrary")),
    )(*args)


# ----------------------------------------------------------------------------
# Fused LayerNorm -> matmul (-> bias -> QuickGELU).  LayerNorm is computed once
# per row tile (cached in a bf16 VMEM scratch under j==0) and reused for all N tiles.
# ----------------------------------------------------------------------------
def _ln_linear_kernel(has_bias, act, eps):
    def kernel(x_ref, g_ref, bln_ref, w_ref, *rest):
        if has_bias:
            bias_ref, o_ref, h_ref = rest
        else:
            o_ref, h_ref = rest

        @pl.when(pl.program_id(1) == 0)
        def _norm():
            x = x_ref[...].astype(jnp.float32)
            mu = jnp.mean(x, axis=-1, keepdims=True)
            xc = x - mu
            var = jnp.mean(xc * xc, axis=-1, keepdims=True)
            h = xc * jax.lax.rsqrt(var + eps)
            h_ref[...] = (h * g_ref[...] + bln_ref[...]).astype(h_ref.dtype)

        y = jnp.dot(h_ref[...], w_ref[...].astype(jnp.bfloat16),
                    preferred_element_type=jnp.float32)
        if has_bias:
            y = y + bias_ref[...].astype(jnp.float32)
        if act == "quick_gelu":
            y = y * jax.nn.sigmoid(1.702 * y)
        o_ref[...] = y.astype(o_ref.dtype)

    return kernel


def ln_linear(x, g, b_ln, w, b=None, act=None, eps=1e-5, tm=256, tn=512,
              out_dtype=jnp.bfloat16):
    """LayerNorm(x) @ w [+ b], optional QuickGELU.  x: (M, K), w: (K, N)."""
    M, K = x.shape
    N = w.shape[1]
    TM = _pick_tile(M, tm, 16)
    TN = _pick_tile(N, tn, 128)
    gm, gn = M // TM, N // TN
    has_bias = b is not None

    in_specs = [pl.BlockSpec((TM, K), lambda i, j: (i, 0)),
                pl.BlockSpec((1, K), lambda i, j: (0, 0)),
                pl.BlockSpec((1, K), lambda i, j: (0, 0)),
                pl.BlockSpec((K, TN), lambda i, j: (0, j))]
    args = [x, g.reshape(1, K), b_ln.reshape(1, K), w]
    if has_bias:
        in_specs.append(pl.BlockSpec((1, TN), lambda i, j: (0, j)))
        args.append(b.reshape(1, N))

    return pl.pallas_call(
        _ln_linear_kernel(has_bias, act, eps),
        out_shape=jax.ShapeDtypeStruct((M, N), out_dtype),
        grid_spec=pltpu.PrefetchScalarGridSpec(
            num_scalar_prefetch=0, grid=(gm, gn),
            in_specs=in_specs,
            out_specs=pl.BlockSpec((TM, TN), lambda i, j: (i, j)),
            scratch_shapes=[pltpu.VMEM((TM, K), jnp.bfloat16)]),
        compiler_params=pltpu.CompilerParams(
            dimension_semantics=("parallel", "arbitrary")),
    )(*args)


# ----------------------------------------------------------------------------
# Fused positional-embedding add + LayerNorm (ln_pre).  x: (BF, Lp, W).
# ----------------------------------------------------------------------------
def _pos_ln_kernel(eps):
    def kernel(x_ref, pos_ref, g_ref, b_ref, o_ref):
        x = x_ref[...].astype(jnp.float32) + pos_ref[...].astype(jnp.float32)
        mu = jnp.mean(x, axis=-1, keepdims=True)
        xc = x - mu
        var = jnp.mean(xc * xc, axis=-1, keepdims=True)
        o_ref[...] = (xc * jax.lax.rsqrt(var + eps) * g_ref[...]
                      + b_ref[...]).astype(o_ref.dtype)
    return kernel


def pos_layernorm(x, pos, g, b, eps=1e-5):
    BF, Lp, W = x.shape
    BB = _pick_batch(BF, Lp)
    return pl.pallas_call(
        _pos_ln_kernel(eps),
        out_shape=jax.ShapeDtypeStruct((BF, Lp, W), jnp.bfloat16),
        grid=(BF // BB,),
        in_specs=[pl.BlockSpec((BB, Lp, W), lambda i: (i, 0, 0)),
                  pl.BlockSpec((1, Lp, W), lambda i: (0, 0, 0)),
                  pl.BlockSpec((1, 1, W), lambda i: (0, 0, 0)),
                  pl.BlockSpec((1, 1, W), lambda i: (0, 0, 0))],
        out_specs=pl.BlockSpec((BB, Lp, W), lambda i: (i, 0, 0)),
        compiler_params=pltpu.CompilerParams(dimension_semantics=("parallel",)),
    )(x, pos.reshape(1, Lp, W), g.reshape(1, 1, W), b.reshape(1, 1, W))


# ----------------------------------------------------------------------------
# Multi-head self-attention: BB images per grid step, per-head batched dot_general
# over the image axis, results written directly into o_ref lane slices.
# Padded key columns (token index >= l_real) are masked before softmax.
# ----------------------------------------------------------------------------
def _attn_kernel(heads, head_dim, scale, l_real, l_pad):
    width = heads * head_dim
    need_mask = l_pad != l_real
    # TODO(synk): for head_dim=64 (real ViT-L) the per-head lane slices are not
    # 128-aligned; a pre-permuted (3, heads, L, Dh) qkv layout would avoid relayouts.

    def kernel(qkv_ref, o_ref):
        qkv = qkv_ref[...]                              # (BB, Lp, 3*width) bf16
        if need_mask:
            col = jax.lax.broadcasted_iota(jnp.int32, (1, 1, l_pad), 2)
        for h in range(heads):                          # static, small
            lo = h * head_dim
            q = qkv[:, :, lo:lo + head_dim]
            k = qkv[:, :, width + lo:width + lo + head_dim]
            v = qkv[:, :, 2 * width + lo:2 * width + lo + head_dim]
            s = jax.lax.dot_general(q, k, (((2,), (2,)), ((0,), (0,))),
                                    preferred_element_type=jnp.float32)  # (BB,Lq,Lk)
            s = s * scale
            if need_mask:
                s = jnp.where(col < l_real, s, -1e30)
            s = s - jnp.max(s, axis=-1, keepdims=True)
            p = jnp.exp(s)
            # approx reciprocal (EUP): ~1e-3 rel error on attention weights,
            # well inside the test tolerance.
            p = p * pl.reciprocal(jnp.sum(p, axis=-1, keepdims=True), approx=True)
            o = jax.lax.dot_general(p.astype(jnp.bfloat16), v,
                                    (((2,), (1,)), ((0,), (0,))),
                                    preferred_element_type=jnp.float32)  # (BB,Lq,Dh)
            o_ref[:, :, lo:lo + head_dim] = o.astype(o_ref.dtype)

    return kernel


def attention(qkv, heads, head_dim, scale, l_real):
    """qkv: (BF, Lp, 3*width) bf16 -> (BF, Lp, width) bf16."""
    BF, Lp, threeW = qkv.shape
    width = heads * head_dim
    BB = _pick_batch(BF, Lp)
    return pl.pallas_call(
        _attn_kernel(heads, head_dim, scale, l_real, Lp),
        out_shape=jax.ShapeDtypeStruct((BF, Lp, width), jnp.bfloat16),
        grid=(BF // BB,),
        in_specs=[pl.BlockSpec((BB, Lp, threeW), lambda i: (i, 0, 0))],
        out_specs=pl.BlockSpec((BB, Lp, width), lambda i: (i, 0, 0)),
        compiler_params=pltpu.CompilerParams(dimension_semantics=("parallel",)),
    )(qkv)


# ----------------------------------------------------------------------------
# Visual projection: temporal-embedding add + Linear(768,768) + LayerNorm(1e-12),
# all fused; temporal embedding is selected per frame by the index_map.
# ----------------------------------------------------------------------------
def _temporal_linear_ln_kernel(eps):
    def kernel(x_ref, t_ref, w_ref, b_ref, g_ref, beta_ref, o_ref):
        x = x_ref[...].astype(jnp.float32) + t_ref[...].astype(jnp.float32)
        Lp, D = x.shape[-2], x.shape[-1]
        x = x.reshape(Lp, D)
        y = jnp.dot(x.astype(jnp.bfloat16), w_ref[...],
                    preferred_element_type=jnp.float32)
        y = y + b_ref[...]
        mu = jnp.mean(y, axis=-1, keepdims=True)
        yc = y - mu
        var = jnp.mean(yc * yc, axis=-1, keepdims=True)
        out = yc * jax.lax.rsqrt(var + eps) * g_ref[...] + beta_ref[...]
        o_ref[...] = out.reshape(o_ref.shape).astype(o_ref.dtype)
    return kernel


def temporal_linear_ln(x, temporal, w, b, g, beta, eps=1e-12):
    """x: (B, n_frame, Lp, D) bf16; temporal: (n_frame, 1, D) f32 -> (B, n_frame, Lp, D) f32."""
    B, n_frame, Lp, D = x.shape
    return pl.pallas_call(
        _temporal_linear_ln_kernel(eps),
        out_shape=jax.ShapeDtypeStruct((B, n_frame, Lp, D), jnp.float32),
        grid=(B, n_frame),
        in_specs=[pl.BlockSpec((1, 1, Lp, D), lambda bb, f: (bb, f, 0, 0)),
                  pl.BlockSpec((1, 1, D), lambda bb, f: (f, 0, 0)),
                  pl.BlockSpec((D, D), lambda bb, f: (0, 0)),
                  pl.BlockSpec((1, D), lambda bb, f: (0, 0)),
                  pl.BlockSpec((1, D), lambda bb, f: (0, 0)),
                  pl.BlockSpec((1, D), lambda bb, f: (0, 0))],
        out_specs=pl.BlockSpec((1, 1, Lp, D), lambda bb, f: (bb, f, 0, 0)),
        compiler_params=pltpu.CompilerParams(
            dimension_semantics=("parallel", "parallel")),
    )(x, temporal, w, b.reshape(1, D), g.reshape(1, D), beta.reshape(1, D))


# ----------------------------------------------------------------------------
# IFrameEncoder forward (CLIP VisionTransformer + ln_post_hidden / proj_hidden)
# ----------------------------------------------------------------------------
def iframe_encoder_forward(x_img, p):
    """x_img: (BF, 3, H, W) NCHW bf16 -> ((BF, Lp, out_dim) bf16, L_real)."""
    BF, C, H, W_img = x_img.shape
    P = p["patch_size"]
    width = p["width"]
    heads = p["heads"]
    gh, gw = H // P, W_img // P
    N = gh * gw
    L = N + 1
    Lp = _round_up(L, 16)                 # bf16 sublane tile => row tiles stay healthy
    Dh = width // heads
    scale = 1.0 / math.sqrt(Dh)

    # conv1 (stride=patch, no bias) == patch extraction (XLA glue) + tiled matmul
    # TODO(synk): express the patch gather via the matmul index_map / channels-last
    # input for large resolutions to avoid this HBM shuffle.
    patches = x_img.reshape(BF, C, gh, P, gw, P)
    patches = patches.transpose(0, 2, 4, 1, 3, 5).reshape(BF * N, C * P * P)
    x = matmul(patches, p["conv1_w"])                       # (BF*N, width) bf16
    x = x.reshape(BF, N, width)

    # class token + zero-pad to Lp tokens (single XLA concat)
    cls = jnp.broadcast_to(p["class_embedding"].reshape(1, 1, width),
                           (BF, 1, width)).astype(jnp.bfloat16)
    parts = [cls, x]
    if Lp > L:
        parts.append(jnp.zeros((BF, Lp - L, width), jnp.bfloat16))
    x = jnp.concatenate(parts, axis=1)                      # (BF, Lp, width)

    pos = p["positional_embedding"]
    if Lp > L:
        pos = jnp.pad(pos, ((0, Lp - L), (0, 0)))

    # positional-embedding add fused into ln_pre
    x2 = pos_layernorm(x, pos, p["ln_pre_g"], p["ln_pre_b"]).reshape(BF * Lp, width)

    for lp in p["layers"]:
        # --- attention block: x = x + out_proj(attn(ln_1(x))) ---
        qkv = ln_linear(x2, lp["ln1_g"], lp["ln1_b"],
                        lp["in_proj_w_t"], lp["in_proj_b"])          # (BF*Lp, 3*width)
        o = attention(qkv.reshape(BF, Lp, 3 * width), heads, Dh, scale, L)
        x2 = matmul(o.reshape(BF * Lp, width), lp["out_proj_w_t"],
                    b=lp["out_proj_b"], residual=x2)                 # residual fused
        # --- MLP block: x = x + proj(gelu(fc(ln_2(x)))) ---
        h = ln_linear(x2, lp["ln2_g"], lp["ln2_b"],
                      lp["fc_w_t"], lp["fc_b"], act="quick_gelu")
        x2 = matmul(h, lp["proj_w_t"], b=lp["proj_b"], residual=x2)  # residual fused

    # ln_post_hidden + proj_hidden (no bias), fused
    out = ln_linear(x2, p["ln_post_hidden_g"], p["ln_post_hidden_b"], p["proj_hidden"])
    return out.reshape(BF, Lp, -1), L


# ----------------------------------------------------------------------------
# VideoEncoder forward — frames folded into the batch, one ViT pass.
# ----------------------------------------------------------------------------
def video_encoder_forward(frames, params):
    """frames: (B, n_frame, 3, H, W) f32 -> (B, n_frame*(num_patches+1), 768) f32."""
    B, n_frame = frames.shape[0], frames.shape[1]
    x = frames.astype(jnp.bfloat16).reshape((B * n_frame,) + frames.shape[2:])
    f, L = iframe_encoder_forward(x, params["vit"])           # (B*n_frame, Lp, 768) bf16
    Lp, D = f.shape[1], f.shape[2]
    f = f.reshape(B, n_frame, Lp, D)
    temporal = jnp.concatenate(params["temporal"], axis=0)    # (n_frame, 1, 768) f32
    h = temporal_linear_ln(f, temporal, params["vp_w_t"], params["vp_b"],
                           params["vp_ln_g"], params["vp_ln_b"], eps=1e-12)
    return h[:, :, :L, :].reshape(B, n_frame * L, D)          # drop padded tokens


# ----------------------------------------------------------------------------
# Pure-jnp reference with MATCHED precision (bf16 HBM activations / MXU operands,
# f32 element-wise math & accumulation), computed at the unpadded token count.
# ----------------------------------------------------------------------------
def _bf16_dot(a, b):
    return jnp.dot(a.astype(jnp.bfloat16), b.astype(jnp.bfloat16),
                   preferred_element_type=jnp.float32)


def _ref_ln(x, g, b, eps=1e-5):
    mu = jnp.mean(x, -1, keepdims=True)
    xc = x - mu
    var = jnp.mean(xc * xc, -1, keepdims=True)
    return xc * jax.lax.rsqrt(var + eps) * g + b


def _ref_attn(qkv, heads, head_dim, scale):
    BF, L, _ = qkv.shape
    W = heads * head_dim

    def split(t):
        return t.reshape(BF, L, heads, head_dim).transpose(0, 2, 1, 3)

    q, k, v = split(qkv[..., :W]), split(qkv[..., W:2 * W]), split(qkv[..., 2 * W:])
    s = jnp.einsum("bhqd,bhkd->bhqk", q, k,
                   preferred_element_type=jnp.float32) * scale
    p = jax.nn.softmax(s, axis=-1)
    o = jnp.einsum("bhqk,bhkd->bhqd", p.astype(jnp.bfloat16), v,
                   preferred_element_type=jnp.float32)
    return o.transpose(0, 2, 1, 3).reshape(BF, L, W).astype(jnp.bfloat16)


def _ref_iframe(x_img, p):
    BF, C, H, W_img = x_img.shape
    P, width, heads = p["patch_size"], p["width"], p["heads"]
    gh, gw = H // P, W_img // P
    N = gh * gw
    L = N + 1
    Dh = width // heads
    scale = 1.0 / math.sqrt(Dh)
    patches = x_img.reshape(BF, C, gh, P, gw, P).transpose(0, 2, 4, 1, 3, 5)
    patches = patches.reshape(BF, N, C * P * P)
    x = _bf16_dot(patches, p["conv1_w"]).astype(jnp.bfloat16)
    cls = jnp.broadcast_to(p["class_embedding"].reshape(1, 1, width),
                           (BF, 1, width)).astype(jnp.bfloat16)
    x = jnp.concatenate([cls, x], axis=1)
    x = x.astype(jnp.float32) + p["positional_embedding"][None]
    x = _ref_ln(x, p["ln_pre_g"], p["ln_pre_b"]).astype(jnp.bfloat16)
    for lp in p["layers"]:
        h = _ref_ln(x.astype(jnp.float32), lp["ln1_g"], lp["ln1_b"]).astype(jnp.bfloat16)
        qkv = (_bf16_dot(h, lp["in_proj_w_t"]) + lp["in_proj_b"]).astype(jnp.bfloat16)
        o = _ref_attn(qkv, heads, Dh, scale)
        x = (x.astype(jnp.float32) + _bf16_dot(o, lp["out_proj_w_t"])
             + lp["out_proj_b"]).astype(jnp.bfloat16)
        h = _ref_ln(x.astype(jnp.float32), lp["ln2_g"], lp["ln2_b"]).astype(jnp.bfloat16)
        y = _bf16_dot(h, lp["fc_w_t"]) + lp["fc_b"]
        y = (y * jax.nn.sigmoid(1.702 * y)).astype(jnp.bfloat16)
        x = (x.astype(jnp.float32) + _bf16_dot(y, lp["proj_w_t"])
             + lp["proj_b"]).astype(jnp.bfloat16)
    h = _ref_ln(x.astype(jnp.float32), p["ln_post_hidden_g"],
                p["ln_post_hidden_b"]).astype(jnp.bfloat16)
    return _bf16_dot(h, p["proj_hidden"]).astype(jnp.bfloat16)


def _ref_video(frames, params):
    B, n_frame = frames.shape[:2]
    x = frames.astype(jnp.bfloat16).reshape((B * n_frame,) + frames.shape[2:])
    f = _ref_iframe(x, params["vit"])                        # (BF, L, 768) bf16
    L, D = f.shape[1], f.shape[2]
    temporal = jnp.concatenate(params["temporal"], axis=0)   # (n_frame, 1, 768)
    f = f.reshape(B, n_frame, L, D).astype(jnp.float32) + temporal[None]
    y = _bf16_dot(f, params["vp_w_t"]) + params["vp_b"]
    y = _ref_ln(y, params["vp_ln_g"], params["vp_ln_b"], eps=1e-12)
    return y.reshape(B, n_frame * L, D)


# ----------------------------------------------------------------------------
# Deterministic parameter init + one-time bf16 weight cast
# ----------------------------------------------------------------------------
def init_params(key, *, width=256, layers=2, heads=2, patch=16, resolution=32,
                out_dim=768, n_frame=2):
    keys = iter(jax.random.split(key, 256))

    def rnd(shape, scale=0.02):
        return (scale * jax.random.normal(next(keys), shape)).astype(jnp.float32)

    grid = resolution // patch
    L = grid * grid + 1
    vit = {
        "patch_size": patch, "width": width, "heads": heads,
        "conv1_w": rnd((3 * patch * patch, width)),
        "class_embedding": rnd((width,)),
        "positional_embedding": rnd((L, width)),
        "ln_pre_g": jnp.ones((width,), jnp.float32) + rnd((width,)),
        "ln_pre_b": rnd((width,)),
        "ln_post_hidden_g": jnp.ones((width,), jnp.float32) + rnd((width,)),
        "ln_post_hidden_b": rnd((width,)),
        "proj_hidden": rnd((width, out_dim), scale=width ** -0.5),
        "layers": [],
    }
    for _ in range(layers):
        vit["layers"].append({
            "ln1_g": jnp.ones((width,), jnp.float32) + rnd((width,)),
            "ln1_b": rnd((width,)),
            "in_proj_w_t": rnd((width, 3 * width)),
            "in_proj_b": rnd((3 * width,)),
            "out_proj_w_t": rnd((width, width)),
            "out_proj_b": rnd((width,)),
            "ln2_g": jnp.ones((width,), jnp.float32) + rnd((width,)),
            "ln2_b": rnd((width,)),
            "fc_w_t": rnd((width, 4 * width)),
            "fc_b": rnd((4 * width,)),
            "proj_w_t": rnd((4 * width, width)),
            "proj_b": rnd((width,)),
        })
    return {
        "vit": vit,
        # torch inits these to zeros — small random values exercise the fused add.
        "temporal": [rnd((1, 1, out_dim)) for _ in range(n_frame)],
        "vp_w_t": rnd((out_dim, out_dim)),
        "vp_b": rnd((out_dim,)),
        "vp_ln_g": jnp.ones((out_dim,), jnp.float32) + rnd((out_dim,)),
        "vp_ln_b": rnd((out_dim,)),
    }


def prepare_params(params):
    """One-time cast of all matmul weights to bf16 (halves HBM weight traffic)."""
    def c(t):
        return t.astype(jnp.bfloat16)

    vit = dict(params["vit"])
    vit["conv1_w"] = c(vit["conv1_w"])
    vit["class_embedding"] = c(vit["class_embedding"])
    vit["proj_hidden"] = c(vit["proj_hidden"])
    new_layers = []
    for lp in vit["layers"]:
        lp = dict(lp)
        for k in ("in_proj_w_t", "out_proj_w_t", "fc_w_t", "proj_w_t"):
            lp[k] = c(lp[k])
        new_layers.append(lp)
    vit["layers"] = new_layers
    out = dict(params)
    out["vit"] = vit
    out["vp_w_t"] = c(params["vp_w_t"])
    return out


# ----------------------------------------------------------------------------
if __name__ == "__main__":
    key = jax.random.PRNGKey(0)
    k_param, k_in = jax.random.split(key)

    # Small ViT config: 32x32 images, 16x16 patches -> 2x2 grid, 5 tokens/frame
    # (padded to 16 internally), width=256, heads=2 (head_dim=128, lane-aligned).
    B, n_frame, resolution = 2, 2, 32
    params = prepare_params(
        init_params(k_param, width=256, layers=2, heads=2, patch=16,
                    resolution=resolution, out_dim=768, n_frame=n_frame))

    frames = jax.random.normal(k_in, (B, n_frame, 3, resolution, resolution),
                               dtype=jnp.float32)

    out = jax.block_until_ready(video_encoder_forward(frames, params))

    # correctness check against a precision-matched pure-jnp reference
    ref = jax.block_until_ready(_ref_video(frames, params))
    assert out.shape == ref.shape == (B, n_frame * 5, 768), (out.shape, ref.shape)
    np.testing.assert_allclose(np.asarray(out), np.asarray(ref), rtol=2e-2, atol=2e-2)

    print("KERNEL_OK")
</pallas_src>

<mosaic_0001>
module attributes {stable_mosaic.version = 11 : i64} {
  func.func @kernel(%arg0: i32, %arg1: i32, %arg2: i32, %arg3: memref<16x768xbf16, #tpu.memory_space<vmem>>, %arg4: memref<768x256xbf16, #tpu.memory_space<vmem>>, %arg5: memref<16x256xbf16, #tpu.memory_space<vmem>>, %arg6: memref<16x256xf32, #tpu.memory_space<vmem>>) attributes {dimension_semantics = [#tpu.dimension_semantics<parallel>, #tpu.dimension_semantics<parallel>, #tpu.dimension_semantics<arbitrary>], iteration_bounds = array<i64: 1, 1, 1>, scalar_prefetch = 0 : i64, scratch_operands = 1 : i64, tpu.core_type = #tpu.core_type<tc>, window_params = [{transform_indices = @transform_0, window_bounds = array<i64: 16, 768>}, {transform_indices = @transform_1, window_bounds = array<i64: 768, 256>}, {transform_indices = @transform_2, window_bounds = array<i64: 16, 256>}]} {
    %c0_i32 = arith.constant 0 : i32
    %0 = arith.cmpi eq, %arg2, %c0_i32 : i32
    %1 = arith.extui %0 : i1 to i32
    %c0_i32_0 = arith.constant 0 : i32
    %2 = arith.cmpi ne, %1, %c0_i32_0 : i32
    scf.if %2 {
      %cst_10 = arith.constant 0.000000e+00 : f32
      %12 = vector.broadcast %cst_10 : f32 to vector<16x256xf32>
      %c0_11 = arith.constant 0 : index
      %c0_12 = arith.constant 0 : index
      %13 = vector.load %arg6[%c0_11, %c0_12] : memref<16x256xf32, #tpu.memory_space<vmem>>, vector<16x256xf32>
      tpu.vector_store %arg6[%c0_11, %c0_12], %12 {strides = array<i32>} : memref<16x256xf32, #tpu.memory_space<vmem>>, vector<16x256xf32>,
    } else {
    }
    %c0 = arith.constant 0 : index
    %c0_1 = arith.constant 0 : index
    %3 = vector.load %arg6[%c0, %c0_1] : memref<16x256xf32, #tpu.memory_space<vmem>>, vector<16x256xf32>
    %c0_2 = arith.constant 0 : index
    %c0_3 = arith.constant 0 : index
    %4 = vector.load %arg3[%c0_2, %c0_3] : memref<16x768xbf16, #tpu.memory_space<vmem>>, vector<16x768xbf16>
    %c0_4 = arith.constant 0 : index
    %c0_5 = arith.constant 0 : index
    %5 = vector.load %arg4[%c0_4, %c0_5] : memref<768x256xbf16, #tpu.memory_space<vmem>>, vector<768x256xbf16>
    %cst = arith.constant dense<0.000000e+00> : vector<16x256xf32>
    %6 = tpu.matmul %4, %5, %cst {dimension_numbers = #tpu.dot_dimension_numbers<[1], [0], [0], [1], [0, 0, 1, 1], [], []>} : vector<16x768xbf16>, vector<768x256xbf16>, vector<16x256xf32> -> vector<16x256xf32>
    %7 = arith.addf %3, %6 : vector<16x256xf32>
    %c0_6 = arith.constant 0 : index
    %c0_7 = arith.constant 0 : index
    %8 = vector.load %arg6[%c0_6, %c0_7] : memref<16x256xf32, #tpu.memory_space<vmem>>, vector<16x256xf32>
    tpu.vector_store %arg6[%c0_6, %c0_7], %7 {strides = array<i32>} : memref<16x256xf32, #tpu.memory_space<vmem>>, vector<16x256xf32>,
    %c0_i32_8 = arith.constant 0 : i32
    %9 = arith.cmpi eq, %arg2, %c0_i32_8 : i32
    %10 = arith.extui %9 : i1 to i32
    %c0_i32_9 = arith.constant 0 : i32
    %11 = arith.cmpi ne, %10, %c0_i32_9 : i32
    scf.if %11 {
      %c0_10 = arith.constant 0 : index
      %c0_11 = arith.constant 0 : index
      %12 = vector.load %arg6[%c0_10, %c0_11] : memref<16x256xf32, #tpu.memory_space<vmem>>, vector<16x256xf32>
      %13 = arith.truncf %12 : vector<16x256xf32> to vector<16x256xbf16>
      %c0_12 = arith.constant 0 : index
      %c0_13 = arith.constant 0 : index
      %14 = vector.load %arg5[%c0_12, %c0_13] : memref<16x256xbf16, #tpu.memory_space<vmem>>, vector<16x256xbf16>
      tpu.vector_store %arg5[%c0_12, %c0_13], %13 {strides = array<i32>} : memref<16x256xbf16, #tpu.memory_space<vmem>>, vector<16x256xbf16>,
    } else {
    }
    return
  }
  func.func @transform_0(%arg0: i32, %arg1: i32, %arg2: i32) -> (i32, i32) {
    %c0_i32 = arith.constant 0 : i32
    return %arg0, %arg2 : i32, i32
  }
  func.func @transform_1(%arg0: i32, %arg1: i32, %arg2: i32) -> (i32, i32) {
    %c0_i32 = arith.constant 0 : i32
    return %arg2, %arg1 : i32, i32
  }
  func.func @transform_2(%arg0: i32, %arg1: i32, %arg2: i32) -> (i32, i32) {
    %c0_i32 = arith.constant 0 : i32
    return %arg0, %arg1 : i32, i32
  }
}

</mosaic_0001>

<llo_original>
// kernel: tpu_custom_call.1
$region0: #{tpu_custom_call.1}
  #allocation0 [shape = 'u32[]', space=smem, size = 0x4, offset = 0x4, fixed_abs, tag = 'smem constant byte address 0x4 - core index']
  #allocation1 [shape = 'u32[144,128]{1,0:T(1,128)}', space=vmem, size = 0x12000, scoped, tag = 'internal scratch']
  #allocation2 [shape = 'f32[16,256]{1,0:T(8,128)}', space=vmem, size = 0x4000, scoped, tag = 'scratch operand']
  %s0 = inlined_call_operand.hbm [shape: bf16[16,768], index: 0, kind: input, shape index: {}]
  %s1 = inlined_call_operand.hbm [shape: bf16[768,256], index: 1, kind: input, shape index: {}]
  %s2 = inlined_call_operand.hbm [shape: bf16[16,256], index: 2, kind: output, shape index: {}]
  %s3 = sld [smem:[#allocation0]]
  $region34: #{tpu_custom_call.1} parent=0
    _
  %s5 = ssub.s32 1, %s3
  %s6 = scalar_select 0, %s5, %s3
  $region1: #{tpu_custom_call.1} parent=0
    #allocation3 [shape = 'u8[24576]{0}', space=vmem, size = 0x6000, scoped, tag = 'input window, operand 0, single buffered']
    #allocation4 [shape = 's32[1]{0}', space=sflag, size = 0x4, scoped, tag = 'scoped memory for tpu_custom_call.1']
    #allocation5 [shape = 's32[1]{0}', space=sflag, size = 0x4, scoped, tag = 'scoped memory for tpu_custom_call.1']
    #allocation6 [shape = 'u8[393216]{0}', space=vmem, size = 0x60000, scoped, tag = 'input window, operand 1, single buffered']
    #allocation7 [shape = 's32[1]{0}', space=sflag, size = 0x4, scoped, tag = 'scoped memory for tpu_custom_call.1']
    #allocation8 [shape = 'u8[8192]{0}', space=vmem, size = 0x2000, scoped, tag = 'output window, operand 0, single buffered']
    %7 = vsyncpa [#allocation4], 0
    %8 = vsyncpa [#allocation7], 0
    %9 = vsyncpa [#allocation5], 0
    // Predicated region
    $region2: #{tpu_custom_call.1} parent=1 // pred_check
      _
    $region3: #{tpu_custom_call.1} parent=1 // pred_check_branch
      %11 = sbr.rel (0) target = $region5
    $region4: #{tpu_custom_call.1} parent=1 // pred_region
      %s13 = ssub.s32 768, 768
      %14 = vsyncadd [#allocation4], %s13
      %s15 = sshll.u32 [#allocation3], 4
      %s16 = int_to_ptr.vmem [resolvable:$true] %s15
      %21 = dma.hbm_to_vmem [thread:$0]  %s0, 768, %s16, [#allocation4], 384, 384, 24
    $region5: #{tpu_custom_call.1} parent=1 // pred_fallthru
      _
    // Predicated region
    $region6: #{tpu_custom_call.1} parent=1 // pred_check
      _
    $region7: #{tpu_custom_call.1} parent=1 // pred_check_branch
      %23 = sbr.rel (0) target = $region9
    $region8: #{tpu_custom_call.1} parent=1 // pred_region
      %s25 = ssub.s32 12288, 12288
      %26 = vsyncadd [#allocation7], %s25
      %s27 = sshll.u32 [#allocation6], 4
      %s28 = int_to_ptr.vmem [resolvable:$true] %s27
      %33 = dma.hbm_to_vmem [thread:$0]  %s1, 12288, %s28, [#allocation7], 128, 128, 8
    $region9: #{tpu_custom_call.1} parent=1 // pred_fallthru
      _
    // Predicated region
    $region10: #{tpu_custom_call.1} parent=1 // pred_check
      _
    $region11: #{tpu_custom_call.1} parent=1 // pred_check_branch
      %35 = sbr.rel (0) target = $region13
    $region12: #{tpu_custom_call.1} parent=1 // pred_region
      %36 = dma.done [#allocation4], 768
    $region13: #{tpu_custom_call.1} parent=1 // pred_fallthru
      _
    // Predicated region
    $region14: #{tpu_custom_call.1} parent=1 // pred_check
      _
    $region15: #{tpu_custom_call.1} parent=1 // pred_check_branch
      %38 = sbr.rel (0) target = $region17
    $region16: #{tpu_custom_call.1} parent=1 // pred_region
      %39 = dma.done [#allocation7], 12288
    $region17: #{tpu_custom_call.1} parent=1 // pred_fallthru
      _
    %p40 = scmp.eq.s32.totalorder 0, 0
    // Predicated region
    $region18: #{tpu_custom_call.1} parent=1 // pred_check
      %p41 = pneg %p40
    $region19: #{tpu_custom_call.1} parent=1 // pred_check_branch
      %43 = sbr.rel (%p41) target = $region21
    $region20: #{tpu_custom_call.1} parent=1 // pred_region
      %44 = vst [vmem:[#allocation2] sm:$0xff] 0.0
      %45 = vst [vmem:[#allocation2 + $0x8] sm:$0xff] 0.0
      %46 = vst [vmem:[#allocation2 + $0x10] sm:$0xff] 0.0
      %47 = vst [vmem:[#allocation2 + $0x18] sm:$0xff] 0.0
    $region21: #{tpu_custom_call.1} parent=1 // pred_fallthru
      _
    %v48 = vld [vmem:[#allocation2] sm:$0xff]
    %v49 = vld [vmem:[#allocation2 + $0x8] sm:$0xff]
    %v50 = vld [vmem:[#allocation2 + $0x10] sm:$0xff]
    %v51 = vld [vmem:[#allocation2 + $0x18] sm:$0xff]
    %v52 = vld [vmem:[#allocation3] sm:$0xff]
    %v53 = vld [vmem:[#allocation3 + $0x8] sm:$0xff]
    %v54 = vld [vmem:[#allocation3 + $0x10] sm:$0xff]
    %v55 = vld [vmem:[#allocation3 + $0x18] sm:$0xff]
    %v56 = vld [vmem:[#allocation3 + $0x20] sm:$0xff]
    %v57 = vld [vmem:[#allocation3 + $0x28] sm:$0xff]
    %v58 = vld [vmem:[#allocation6] sm:$0xff]
    %v59 = vld [vmem:[#allocation6 + $0x8] sm:$0xff]
    %v60 = vld [vmem:[#allocation6 + $0x10] sm:$0xff]
    %v61 = vld [vmem:[#allocation6 + $0x18] sm:$0xff]
    %v62 = vld [vmem:[#allocation6 + $0x20] sm:$0xff]
    %v63 = vld [vmem:[#allocation6 + $0x28] sm:$0xff]
    %v64 = vld [vmem:[#allocation6 + $0x30] sm:$0xff]
    %v65 = vld [vmem:[#allocation6 + $0x38] sm:$0xff]
    %v66 = vld [vmem:[#allocation6 + $0x40] sm:$0xff]
    %v67 = vld [vmem:[#allocation6 + $0x48] sm:$0xff]
    %v68 = vld [vmem:[#allocation6 + $0x50] sm:$0xff]
    %v69 = vld [vmem:[#allocation6 + $0x58] sm:$0xff]
    %v70 = vld [vmem:[#allocation6 + $0x60] sm:$0xff]
    %v71 = vld [vmem:[#allocation6 + $0x68] sm:$0xff]
    %v72 = vld [vmem:[#allocation6 + $0x70] sm:$0xff]
    %v73 = vld [vmem:[#allocation6 + $0x78] sm:$0xff]
    %v74 = vld [vmem:[#allocation6 + $0x80] sm:$0xff]
    %v75 = vld [vmem:[#allocation6 + $0x88] sm:$0xff]
    %v76 = vld [vmem:[#allocation6 + $0x90] sm:$0xff]
    %v77 = vld [vmem:[#allocation6 + $0x98] sm:$0xff]
    %v78 = vld [vmem:[#allocation6 + $0xa0] sm:$0xff]
    %v79 = vld [vmem:[#allocation6 + $0xa8] sm:$0xff]
    %v80 = vld [vmem:[#allocation6 + $0xb0] sm:$0xff]
    %v81 = vld [vmem:[#allocation6 + $0xb8] sm:$0xff]
    %v82 = vld [vmem:[#allocation6 + $0xc0] sm:$0xff]
    %v83 = vld [vmem:[#allocation6 + $0xc8] sm:$0xff]
    %v84 = vld [vmem:[#allocation6 + $0xd0] sm:$0xff]
    %v85 = vld [vmem:[#allocation6 + $0xd8] sm:$0xff]
    %v86 = vld [vmem:[#allocation6 + $0xe0] sm:$0xff]
    %v87 = vld [vmem:[#allocation6 + $0xe8] sm:$0xff]
    %v88 = vld [vmem:[#allocation6 + $0xf0] sm:$0xff]
    %v89 = vld [vmem:[#allocation6 + $0xf8] sm:$0xff]
    %v90 = vld [vmem:[#allocation6 + $0x100] sm:$0xff]
    %v91 = vld [vmem:[#allocation6 + $0x108] sm:$0xff]
    %v92 = vld [vmem:[#allocation6 + $0x110] sm:$0xff]
    %v93 = vld [vmem:[#allocation6 + $0x118] sm:$0xff]
    %v94 = vld [vmem:[#allocation6 + $0x120] sm:$0xff]
    %v95 = vld [vmem:[#allocation6 + $0x128] sm:$0xff]
    %v96 = vld [vmem:[#allocation6 + $0x130] sm:$0xff]
    %v97 = vld [vmem:[#allocation6 + $0x138] sm:$0xff]
    %v98 = vld [vmem:[#allocation6 + $0x140] sm:$0xff]
    %v99 = vld [vmem:[#allocation6 + $0x148] sm:$0xff]
    %v100 = vld [vmem:[#allocation6 + $0x150] sm:$0xff]
    %v101 = vld [vmem:[#allocation6 + $0x158] sm:$0xff]
    %v102 = vld [vmem:[#allocation6 + $0x160] sm:$0xff]
    %v103 = vld [vmem:[#allocation6 + $0x168] sm:$0xff]
    %v104 = vld [vmem:[#allocation6 + $0x170] sm:$0xff]
    %v105 = vld [vmem:[#allocation6 + $0x178] sm:$0xff]
    %v106 = vld [vmem:[#allocation6 + $0x180] sm:$0xff]
    %v107 = vld [vmem:[#allocation6 + $0x188] sm:$0xff]
    %v108 = vld [vmem:[#allocation6 + $0x190] sm:$0xff]
    %v109 = vld [vmem:[#allocation6 + $0x198] sm:$0xff]
    %v110 = vld [vmem:[#allocation6 + $0x1a0] sm:$0xff]
    %v111 = vld [vmem:[#allocation6 + $0x1a8] sm:$0xff]
    %v112 = vld [vmem:[#allocation6 + $0x1b0] sm:$0xff]
    %v113 = vld [vmem:[#allocation6 + $0x1b8] sm:$0xff]
    %v114 = vld [vmem:[#allocation6 + $0x1c0] sm:$0xff]
    %v115 = vld [vmem:[#allocation6 + $0x1c8] sm:$0xff]
    %v116 = vld [vmem:[#allocation6 + $0x1d0] sm:$0xff]
    %v117 = vld [vmem:[#allocation6 + $0x1d8] sm:$0xff]
    %v118 = vld [vmem:[#allocation6 + $0x1e0] sm:$0xff]
    %v119 = vld [vmem:[#allocation6 + $0x1e8] sm:$0xff]
    %v120 = vld [vmem:[#allocation6 + $0x1f0] sm:$0xff]
    %v121 = vld [vmem:[#allocation6 + $0x1f8] sm:$0xff]
    %v122 = vld [vmem:[#allocation6 + $0x200] sm:$0xff]
    %v123 = vld [vmem:[#allocation6 + $0x208] sm:$0xff]
    %v124 = vld [vmem:[#allocation6 + $0x210] sm:$0xff]
    %v125 = vld [vmem:[#allocation6 + $0x218] sm:$0xff]
    %v126 = vld [vmem:[#allocation6 + $0x220] sm:$0xff]
    %v127 = vld [vmem:[#allocation6 + $0x228] sm:$0xff]
    %v128 = vld [vmem:[#allocation6 + $0x230] sm:$0xff]
    %v129 = vld [vmem:[#allocation6 + $0x238] sm:$0xff]
    %v130 = vld [vmem:[#allocation6 + $0x240] sm:$0xff]
    %v131 = vld [vmem:[#allocation6 + $0x248] sm:$0xff]
    %v132 = vld [vmem:[#allocation6 + $0x250] sm:$0xff]
    %v133 = vld [vmem:[#allocation6 + $0x258] sm:$0xff]
    %v134 = vld [vmem:[#allocation6 + $0x260] sm:$0xff]
    %v135 = vld [vmem:[#allocation6 + $0x268] sm:$0xff]
    %v136 = vld [vmem:[#allocation6 + $0x270] sm:$0xff]
    %v137 = vld [vmem:[#allocation6 + $0x278] sm:$0xff]
    %v138 = vld [vmem:[#allocation6 + $0x280] sm:$0xff]
    %v139 = vld [vmem:[#allocation6 + $0x288] sm:$0xff]
    %v140 = vld [vmem:[#allocation6 + $0x290] sm:$0xff]
    %v141 = vld [vmem:[#allocation6 + $0x298] sm:$0xff]
    %v142 = vld [vmem:[#allocation6 + $0x2a0] sm:$0xff]
    %v143 = vld [vmem:[#allocation6 + $0x2a8] sm:$0xff]
    %v144 = vld [vmem:[#allocation6 + $0x2b0] sm:$0xff]
    %v145 = vld [vmem:[#allocation6 + $0x2b8] sm:$0xff]
    %v146 = vld [vmem:[#allocation6 + $0x2c0] sm:$0xff]
    %v147 = vld [vmem:[#allocation6 + $0x2c8] sm:$0xff]
    %v148 = vld [vmem:[#allocation6 + $0x2d0] sm:$0xff]
    %v149 = vld [vmem:[#allocation6 + $0x2d8] sm:$0xff]
    %v150 = vld [vmem:[#allocation6 + $0x2e0] sm:$0xff]
    %v151 = vld [vmem:[#allocation6 + $0x2e8] sm:$0xff]
    %v152 = vld [vmem:[#allocation6 + $0x2f0] sm:$0xff]
    %v153 = vld [vmem:[#allocation6 + $0x2f8] sm:$0xff]
    %v160 = vunpack.c.l.b16 %v52
    %v161 = vunpack.c.h.b16 %v52
    %v162 = vunpack.c.l.b16 %v53
    %v163 = vunpack.c.h.b16 %v53
    %v164 = vunpack.c.l.b16 %v54
    %v165 = vunpack.c.h.b16 %v54
    %v166 = vunpack.c.l.b16 %v55
    %v167 = vunpack.c.h.b16 %v55
    %v168 = vunpack.c.l.b16 %v56
    %v169 = vunpack.c.h.b16 %v56
    %v170 = vunpack.c.l.b16 %v57
    %v171 = vunpack.c.h.b16 %v57
    %v172 = vpack.c.b16 %v166, %v160
    %v173 = vpack.c.b16 %v167, %v161
    %v174 = vpack.c.b16 %v168, %v162
    %v175 = vpack.c.b16 %v169, %v163
    %v176 = vpack.c.b16 %v170, %v164
    %v177 = vpack.c.b16 %v171, %v165
    %v280 = vunpack.c.l.b16 %v58
    %v281 = vunpack.c.h.b16 %v58
    %v282 = vunpack.c.l.b16 %v59
    %v283 = vunpack.c.h.b16 %v59
    %v284 = vunpack.c.l.b16 %v60
    %v285 = vunpack.c.h.b16 %v60
    %v286 = vunpack.c.l.b16 %v61
    %v287 = vunpack.c.h.b16 %v61
    %v288 = vunpack.c.l.b16 %v62
    %v289 = vunpack.c.h.b16 %v62
    %v290 = vunpack.c.l.b16 %v63
    %v291 = vunpack.c.h.b16 %v63
    %v292 = vunpack.c.l.b16 %v64
    %v293 = vunpack.c.h.b16 %v64
    %v294 = vunpack.c.l.b16 %v65
    %v295 = vunpack.c.h.b16 %v65
    %v296 = vunpack.c.l.b16 %v66
    %v297 = vunpack.c.h.b16 %v66
    %v298 = vunpack.c.l.b16 %v67
    %v299 = vunpack.c.h.b16 %v67
    %v300 = vunpack.c.l.b16 %v68
    %v301 = vunpack.c.h.b16 %v68
    %v302 = vunpack.c.l.b16 %v69
    %v303 = vunpack.c.h.b16 %v69
    %v304 = vunpack.c.l.b16 %v70
    %v305 = vunpack.c.h.b16 %v70
    %v306 = vunpack.c.l.b16 %v71
    %v307 = vunpack.c.h.b16 %v71
    %v308 = vunpack.c.l.b16 %v72
    %v309 = vunpack.c.h.b16 %v72
    %v310 = vunpack.c.l.b16 %v73
    %v311 = vunpack.c.h.b16 %v73
    %v312 = vunpack.c.l.b16 %v74
    %v313 = vunpack.c.h.b16 %v74
    %v314 = vunpack.c.l.b16 %v75
    %v315 = vunpack.c.h.b16 %v75
    %v316 = vunpack.c.l.b16 %v76
    %v317 = vunpack.c.h.b16 %v76
    %v318 = vunpack.c.l.b16 %v77
    %v319 = vunpack.c.h.b16 %v77
    %v320 = vunpack.c.l.b16 %v78
    %v321 = vunpack.c.h.b16 %v78
    %v322 = vunpack.c.l.b16 %v79
    %v323 = vunpack.c.h.b16 %v79
    %v324 = vunpack.c.l.b16 %v80
    %v325 = vunpack.c.h.b16 %v80
    %v326 = vunpack.c.l.b16 %v81
    %v327 = vunpack.c.h.b16 %v81
    %v328 = vunpack.c.l.b16 %v82
    %v329 = vunpack.c.h.b16 %v82
    %v330 = vunpack.c.l.b16 %v83
    %v331 = vunpack.c.h.b16 %v83
    %v332 = vunpack.c.l.b16 %v84
    %v333 = vunpack.c.h.b16 %v84
    %v334 = vunpack.c.l.b16 %v85
    %v335 = vunpack.c.h.b16 %v85
    %v336 = vunpack.c.l.b16 %v86
    %v337 = vunpack.c.h.b16 %v86
    %v338 = vunpack.c.l.b16 %v87
    %v339 = vunpack.c.h.b16 %v87
    %v340 = vunpack.c.l.b16 %v88
    %v341 = vunpack.c.h.b16 %v88
    %v342 = vunpack.c.l.b16 %v89
    %v343 = vunpack.c.h.b16 %v89
    %v344 = vunpack.c.l.b16 %v90
    %v345 = vunpack.c.h.b16 %v90
    %v346 = vunpack.c.l.b16 %v91
    %v347 = vunpack.c.h.b16 %v91
    %v348 = vunpack.c.l.b16 %v92
    %v349 = vunpack.c.h.b16 %v92
    %v350 = vunpack.c.l.b16 %v93
    %v351 = vunpack.c.h.b16 %v93
    %v352 = vunpack.c.l.b16 %v94
    %v353 = vunpack.c.h.b16 %v94
    %v354 = vunpack.c.l.b16 %v95
    %v355 = vunpack.c.h.b16 %v95
    %v356 = vunpack.c.l.b16 %v96
    %v357 = vunpack.c.h.b16 %v96
    %v358 = vunpack.c.l.b16 %v97
    %v359 = vunpack.c.h.b16 %v97
    %v360 = vunpack.c.l.b16 %v98
    %v361 = vunpack.c.h.b16 %v98
    %v362 = vunpack.c.l.b16 %v99
    %v363 = vunpack.c.h.b16 %v99
    %v364 = vunpack.c.l.b16 %v100
    %v365 = vunpack.c.h.b16 %v100
    %v366 = vunpack.c.l.b16 %v101
    %v367 = vunpack.c.h.b16 %v101
    %v368 = vunpack.c.l.b16 %v102
    %v369 = vunpack.c.h.b16 %v102
    %v370 = vunpack.c.l.b16 %v103
    %v371 = vunpack.c.h.b16 %v103
    %v372 = vunpack.c.l.b16 %v104
    %v373 = vunpack.c.h.b16 %v104
    %v374 = vunpack.c.l.b16 %v105
    %v375 = vunpack.c.h.b16 %v105
    %v376 = vunpack.c.l.b16 %v106
    %v377 = vunpack.c.h.b16 %v106
    %v378 = vunpack.c.l.b16 %v107
    %v379 = vunpack.c.h.b16 %v107
    %v380 = vunpack.c.l.b16 %v108
    %v381 = vunpack.c.h.b16 %v108
    %v382 = vunpack.c.l.b16 %v109
    %v383 = vunpack.c.h.b16 %v109
    %v384 = vunpack.c.l.b16 %v110
    %v385 = vunpack.c.h.b16 %v110
    %v386 = vunpack.c.l.b16 %v111
    %v387 = vunpack.c.h.b16 %v111
    %v388 = vunpack.c.l.b16 %v112
    %v389 = vunpack.c.h.b16 %v112
    %v390 = vunpack.c.l.b16 %v113
    %v391 = vunpack.c.h.b16 %v113
    %v392 = vunpack.c.l.b16 %v114
    %v393 = vunpack.c.h.b16 %v114
    %v394 = vunpack.c.l.b16 %v115
    %v395 = vunpack.c.h.b16 %v115
    %v396 = vunpack.c.l.b16 %v116
    %v397 = vunpack.c.h.b16 %v116
    %v398 = vunpack.c.l.b16 %v117
    %v399 = vunpack.c.h.b16 %v117
    %v400 = vunpack.c.l.b16 %v118
    %v401 = vunpack.c.h.b16 %v118
    %v402 = vunpack.c.l.b16 %v119
    %v403 = vunpack.c.h.b16 %v119
    %v404 = vunpack.c.l.b16 %v120
    %v405 = vunpack.c.h.b16 %v120
    %v406 = vunpack.c.l.b16 %v121
    %v407 = vunpack.c.h.b16 %v121
    %v408 = vunpack.c.l.b16 %v122
    %v409 = vunpack.c.h.b16 %v122
    %v410 = vunpack.c.l.b16 %v123
    %v411 = vunpack.c.h.b16 %v123
    %v412 = vunpack.c.l.b16 %v124
    %v413 = vunpack.c.h.b16 %v124
    %v414 = vunpack.c.l.b16 %v125
    %v415 = vunpack.c.h.b16 %v125
    %v416 = vunpack.c.l.b16 %v126
    %v417 = vunpack.c.h.b16 %v126
    %v418 = vunpack.c.l.b16 %v127
    %v419 = vunpack.c.h.b16 %v127
    %v420 = vunpack.c.l.b16 %v128
    %v421 = vunpack.c.h.b16 %v128
    %v422 = vunpack.c.l.b16 %v129
    %v423 = vunpack.c.h.b16 %v129
    %v424 = vunpack.c.l.b16 %v130
    %v425 = vunpack.c.h.b16 %v130
    %v426 = vunpack.c.l.b16 %v131
    %v427 = vunpack.c.h.b16 %v131
    %v428 = vunpack.c.l.b16 %v132
    %v429 = vunpack.c.h.b16 %v132
    %v430 = vunpack.c.l.b16 %v133
    %v431 = vunpack.c.h.b16 %v133
    %v432 = vunpack.c.l.b16 %v134
    %v433 = vunpack.c.h.b16 %v134
    %v434 = vunpack.c.l.b16 %v135
    %v435 = vunpack.c.h.b16 %v135
    %v436 = vunpack.c.l.b16 %v136
    %v437 = vunpack.c.h.b16 %v136
    %v438 = vunpack.c.l.b16 %v137
    %v439 = vunpack.c.h.b16 %v137
    %v440 = vunpack.c.l.b16 %v138
    %v441 = vunpack.c.h.b16 %v138
    %v442 = vunpack.c.l.b16 %v139
    %v443 = vunpack.c.h.b16 %v139
    %v444 = vunpack.c.l.b16 %v140
    %v445 = vunpack.c.h.b16 %v140
    %v446 = vunpack.c.l.b16 %v141
    %v447 = vunpack.c.h.b16 %v141
    %v448 = vunpack.c.l.b16 %v142
    %v449 = vunpack.c.h.b16 %v142
    %v450 = vunpack.c.l.b16 %v143
    %v451 = vunpack.c.h.b16 %v143
    %v452 = vunpack.c.l.b16 %v144
    %v453 = vunpack.c.h.b16 %v144
    %v454 = vunpack.c.l.b16 %v145
    %v455 = vunpack.c.h.b16 %v145
    %v456 = vunpack.c.l.b16 %v146
    %v457 = vunpack.c.h.b16 %v146
    %v458 = vunpack.c.l.b16 %v147
    %v459 = vunpack.c.h.b16 %v147
    %v460 = vunpack.c.l.b16 %v148
    %v461 = vunpack.c.h.b16 %v148
    %v462 = vunpack.c.l.b16 %v149
    %v463 = vunpack.c.h.b16 %v149
    %v464 = vunpack.c.l.b16 %v150
    %v465 = vunpack.c.h.b16 %v150
    %v466 = vunpack.c.l.b16 %v151
    %v467 = vunpack.c.h.b16 %v151
    %v468 = vunpack.c.l.b16 %v152
    %v469 = vunpack.c.h.b16 %v152
    %v470 = vunpack.c.l.b16 %v153
    %v471 = vunpack.c.h.b16 %v153
    %v472 = vpack.c.b16 %v282, %v280
    %v473 = vpack.c.b16 %v283, %v281
    %v474 = vpack.c.b16 %v286, %v284
    %v475 = vpack.c.b16 %v287, %v285
    %v476 = vpack.c.b16 %v290, %v288
    %v477 = vpack.c.b16 %v291, %v289
    %v478 = vpack.c.b16 %v294, %v292
    %v479 = vpack.c.b16 %v295, %v293
    %v480 = vpack.c.b16 %v298, %v296
    %v481 = vpack.c.b16 %v299, %v297
    %v482 = vpack.c.b16 %v302, %v300
    %v483 = vpack.c.b16 %v303, %v301
    %v484 = vpack.c.b16 %v306, %v304
    %v485 = vpack.c.b16 %v307, %v305
    %v486 = vpack.c.b16 %v310, %v308
    %v487 = vpack.c.b16 %v311, %v309
    %v488 = vpack.c.b16 %v314, %v312
    %v489 = vpack.c.b16 %v315, %v313
    %v490 = vpack.c.b16 %v318, %v316
    %v491 = vpack.c.b16 %v319, %v317
    %v492 = vpack.c.b16 %v322, %v320
    %v493 = vpack.c.b16 %v323, %v321
    %v494 = vpack.c.b16 %v326, %v324
    %v495 = vpack.c.b16 %v327, %v325
    %v496 = vpack.c.b16 %v330, %v328
    %v497 = vpack.c.b16 %v331, %v329
    %v498 = vpack.c.b16 %v334, %v332
    %v499 = vpack.c.b16 %v335, %v333
    %v500 = vpack.c.b16 %v338, %v336
    %v501 = vpack.c.b16 %v339, %v337
    %v502 = vpack.c.b16 %v342, %v340
    %v503 = vpack.c.b16 %v343, %v341
    %v504 = vpack.c.b16 %v346, %v344
    %v505 = vpack.c.b16 %v347, %v345
    %v506 = vpack.c.b16 %v350, %v348
    %v507 = vpack.c.b16 %v351, %v349
    %v508 = vpack.c.b16 %v354, %v352
    %v509 = vpack.c.b16 %v355, %v353
    %v510 = vpack.c.b16 %v358, %v356
    %v511 = vpack.c.b16 %v359, %v357
    %v512 = vpack.c.b16 %v362, %v360
    %v513 = vpack.c.b16 %v363, %v361
    %v514 = vpack.c.b16 %v366, %v364
    %v515 = vpack.c.b16 %v367, %v365
    %v516 = vpack.c.b16 %v370, %v368
    %v517 = vpack.c.b16 %v371, %v369
    %v518 = vpack.c.b16 %v374, %v372
    %v519 = vpack.c.b16 %v375, %v373
    %v520 = vpack.c.b16 %v378, %v376
    %v521 = vpack.c.b16 %v379, %v377
    %v522 = vpack.c.b16 %v382, %v380
    %v523 = vpack.c.b16 %v383, %v381
    %v524 = vpack.c.b16 %v386, %v384
    %v525 = vpack.c.b16 %v387, %v385
    %v526 = vpack.c.b16 %v390, %v388
    %v527 = vpack.c.b16 %v391, %v389
    %v528 = vpack.c.b16 %v394, %v392
    %v529 = vpack.c.b16 %v395, %v393
    %v530 = vpack.c.b16 %v398, %v396
    %v531 = vpack.c.b16 %v399, %v397
    %v532 = vpack.c.b16 %v402, %v400
    %v533 = vpack.c.b16 %v403, %v401
    %v534 = vpack.c.b16 %v406, %v404
    %v535 = vpack.c.b16 %v407, %v405
    %v536 = vpack.c.b16 %v410, %v408
    %v537 = vpack.c.b16 %v411, %v409
    %v538 = vpack.c.b16 %v414, %v412
    %v539 = vpack.c.b16 %v415, %v413
    %v540 = vpack.c.b16 %v418, %v416
    %v541 = vpack.c.b16 %v419, %v417
    %v542 = vpack.c.b16 %v422, %v420
    %v543 = vpack.c.b16 %v423, %v421
    %v544 = vpack.c.b16 %v426, %v424
    %v545 = vpack.c.b16 %v427, %v425
    %v546 = vpack.c.b16 %v430, %v428
    %v547 = vpack.c.b16 %v431, %v429
    %v548 = vpack.c.b16 %v434, %v432
    %v549 = vpack.c.b16 %v435, %v433
    %v550 = vpack.c.b16 %v438, %v436
    %v551 = vpack.c.b16 %v439, %v437
    %v552 = vpack.c.b16 %v442, %v440
    %v553 = vpack.c.b16 %v443, %v441
    %v554 = vpack.c.b16 %v446, %v444
    %v555 = vpack.c.b16 %v447, %v445
    %v556 = vpack.c.b16 %v450, %v448
    %v557 = vpack.c.b16 %v451, %v449
    %v558 = vpack.c.b16 %v454, %v452
    %v559 = vpack.c.b16 %v455, %v453
    %v560 = vpack.c.b16 %v458, %v456
    %v561 = vpack.c.b16 %v459, %v457
    %v562 = vpack.c.b16 %v462, %v460
    %v563 = vpack.c.b16 %v463, %v461
    %v564 = vpack.c.b16 %v466, %v464
    %v565 = vpack.c.b16 %v467, %v465
    %v566 = vpack.c.b16 %v470, %v468
    %v567 = vpack.c.b16 %v471, %v469
    %664 = vmatprep.subr.bf16.mxu0 %v487
    %665 = vmatpush1.bf16.msra.mxu0 %v486
    %666 = vmatprep.subr.bf16.mxu0 %v485
    %667 = vmatpush1.bf16.msra.mxu0 %v484
    %668 = vmatprep.subr.bf16.mxu0 %v483
    %669 = vmatpush1.bf16.msra.mxu0 %v482
    %670 = vmatprep.subr.bf16.mxu0 %v481
    %671 = vmatpush1.bf16.msra.mxu0 %v480
    %672 = vmatprep.subr.bf16.mxu0 %v479
    %673 = vmatpush1.bf16.msra.mxu0 %v478
    %674 = vmatprep.subr.bf16.mxu0 %v477
    %675 = vmatpush1.bf16.msra.mxu0 %v476
    %676 = vmatprep.subr.bf16.mxu0 %v475
    %677 = vmatpush1.bf16.msra.mxu0 %v474
    %678 = vmatprep.subr.bf16.mxu0 %v473
    %679 = vmatpush1.bf16.msra.mxu0 %v472
    %680 = vmatprep.subr.bf16.mxu0 %v503
    %681 = vmatpush2.bf16.msra.mxu0 %v502
    %682 = vmatprep.subr.bf16.mxu0 %v501
    %683 = vmatpush2.bf16.msra.mxu0 %v500
    %684 = vmatprep.subr.bf16.mxu0 %v499
    %685 = vmatpush2.bf16.msra.mxu0 %v498
    %686 = vmatprep.subr.bf16.mxu0 %v497
    %687 = vmatpush2.bf16.msra.mxu0 %v496
    %688 = vmatprep.subr.bf16.mxu0 %v495
    %689 = vmatpush2.bf16.msra.mxu0 %v494
    %690 = vmatprep.subr.bf16.mxu0 %v493
    %691 = vmatpush2.bf16.msra.mxu0 %v492
    %692 = vmatprep.subr.bf16.mxu0 %v491
    %693 = vmatpush2.bf16.msra.mxu0 %v490
    %694 = vmatprep.subr.bf16.mxu0 %v489
    %695 = vmatpush2.bf16.msra.mxu0 %v488
    %696 = vmatprep.mubr.bf16.mxu0 %v173
    %697 = vmatmul.mubr.bf16.gmra.mxu0 %v172
    %v698 = vpop.f32.mrf.mxu0
    %v699 = vadd.f32 0.0, %v698
    %v700 = vpop.f32.mrf.mxu0
    %v701 = vadd.f32 0.0, %v700
    %v702 = vpop.f32.mrf.mxu0
    %v703 = vadd.f32 0.0, %v702
    %v704 = vpop.f32.mrf.mxu0
    %v705 = vadd.f32 0.0, %v704
    %706 = vdwg.mxu0
    %707 = vmatprep.subr.bf16.mxu0 %v519
    %708 = vmatpush1.bf16.msra.mxu0 %v518
    %709 = vmatprep.subr.bf16.mxu0 %v517
    %710 = vmatpush1.bf16.msra.mxu0 %v516
    %711 = vmatprep.subr.bf16.mxu0 %v515
    %712 = vmatpush1.bf16.msra.mxu0 %v514
    %713 = vmatprep.subr.bf16.mxu0 %v513
    %714 = vmatpush1.bf16.msra.mxu0 %v512
    %715 = vmatprep.subr.bf16.mxu0 %v511
    %716 = vmatpush1.bf16.msra.mxu0 %v510
    %717 = vmatprep.subr.bf16.mxu0 %v509
    %718 = vmatpush1.bf16.msra.mxu0 %v508
    %719 = vmatprep.subr.bf16.mxu0 %v507
    %720 = vmatpush1.bf16.msra.mxu0 %v506
    %721 = vmatprep.subr.bf16.mxu0 %v505
    %722 = vmatpush1.bf16.msra.mxu0 %v504
    %723 = vmatprep.subr.bf16.mxu0 %v535
    %724 = vmatpush2.bf16.msra.mxu0 %v534
    %725 = vmatprep.subr.bf16.mxu0 %v533
    %726 = vmatpush2.bf16.msra.mxu0 %v532
    %727 = vmatprep.subr.bf16.mxu0 %v531
    %728 = vmatpush2.bf16.msra.mxu0 %v530
    %729 = vmatprep.subr.bf16.mxu0 %v529
    %730 = vmatpush2.bf16.msra.mxu0 %v528
    %731 = vmatprep.subr.bf16.mxu0 %v527
    %732 = vmatpush2.bf16.msra.mxu0 %v526
    %733 = vmatprep.subr.bf16.mxu0 %v525
    %734 = vmatpush2.bf16.msra.mxu0 %v524
    %735 = vmatprep.subr.bf16.mxu0 %v523
    %736 = vmatpush2.bf16.msra.mxu0 %v522
    %737 = vmatprep.subr.bf16.mxu0 %v521
    %738 = vmatpush2.bf16.msra.mxu0 %v520
    %739 = vmatprep.mubr.bf16.mxu0 %v175
    %740 = vmatmul.mubr.bf16.gmra.mxu0 %v174
    %v741 = vpop.f32.mrf.mxu0
    %v742 = vadd.f32 %v699, %v741
    %v743 = vpop.f32.mrf.mxu0
    %v744 = vadd.f32 %v701, %v743
    %v745 = vpop.f32.mrf.mxu0
    %v746 = vadd.f32 %v703, %v745
    %v747 = vpop.f32.mrf.mxu0
    %v748 = vadd.f32 %v705, %v747
    %749 = vdwg.mxu0
    %750 = vmatprep.subr.bf16.mxu0 %v551
    %751 = vmatpush1.bf16.msra.mxu0 %v550
    %752 = vmatprep.subr.bf16.mxu0 %v549
    %753 = vmatpush1.bf16.msra.mxu0 %v548
    %754 = vmatprep.subr.bf16.mxu0 %v547
    %755 = vmatpush1.bf16.msra.mxu0 %v546
    %756 = vmatprep.subr.bf16.mxu0 %v545
    %757 = vmatpush1.bf16.msra.mxu0 %v544
    %758 = vmatprep.subr.bf16.mxu0 %v543
    %759 = vmatpush1.bf16.msra.mxu0 %v542
    %760 = vmatprep.subr.bf16.mxu0 %v541
    %761 = vmatpush1.bf16.msra.mxu0 %v540
    %762 = vmatprep.subr.bf16.mxu0 %v539
    %763 = vmatpush1.bf16.msra.mxu0 %v538
    %764 = vmatprep.subr.bf16.mxu0 %v537
    %765 = vmatpush1.bf16.msra.mxu0 %v536
    %766 = vmatprep.subr.bf16.mxu0 %v567
    %767 = vmatpush2.bf16.msra.mxu0 %v566
    %768 = vmatprep.subr.bf16.mxu0 %v565
    %769 = vmatpush2.bf16.msra.mxu0 %v564
    %770 = vmatprep.subr.bf16.mxu0 %v563
    %771 = vmatpush2.bf16.msra.mxu0 %v562
    %772 = vmatprep.subr.bf16.mxu0 %v561
    %773 = vmatpush2.bf16.msra.mxu0 %v560
    %774 = vmatprep.subr.bf16.mxu0 %v559
    %775 = vmatpush2.bf16.msra.mxu0 %v558
    %776 = vmatprep.subr.bf16.mxu0 %v557
    %777 = vmatpush2.bf16.msra.mxu0 %v556
    %778 = vmatprep.subr.bf16.mxu0 %v555
    %779 = vmatpush2.bf16.msra.mxu0 %v554
    %780 = vmatprep.subr.bf16.mxu0 %v553
    %781 = vmatpush2.bf16.msra.mxu0 %v552
    %782 = vmatprep.mubr.bf16.mxu0 %v177
    %783 = vmatmul.mubr.bf16.gmra.mxu0 %v176
    %v784 = vpop.f32.mrf.mxu0
    %v785 = vadd.f32 %v742, %v784
    %v786 = vpop.f32.mrf.mxu0
    %v787 = vadd.f32 %v744, %v786
    %v788 = vpop.f32.mrf.mxu0
    %v789 = vadd.f32 %v746, %v788
    %v790 = vpop.f32.mrf.mxu0
    %v791 = vadd.f32 %v748, %v790
    %792 = vdwg.mxu0
    %v793 = vadd.f32 %v48, %v785
    %v794 = vadd.f32 %v49, %v787
    %v795 = vadd.f32 %v50, %v789
    %v796 = vadd.f32 %v51, %v791
    %797 = vst [vmem:[#allocation2] sm:$0xff] %v793
    %798 = vst [vmem:[#allocation2 + $0x8] sm:$0xff] %v794
    %799 = vst [vmem:[#allocation2 + $0x10] sm:$0xff] %v795
    %800 = vst [vmem:[#allocation2 + $0x18] sm:$0xff] %v796
    // Predicated region
    $region22: #{tpu_custom_call.1} parent=1 // pred_check
      %p801 = pneg %p40
    $region23: #{tpu_custom_call.1} parent=1 // pred_check_branch
      %803 = sbr.rel (%p801) target = $region25
    $region24: #{tpu_custom_call.1} parent=1 // pred_region
      %v804 = vld [vmem:[#allocation2] sm:$0xff]
      %v805 = vld [vmem:[#allocation2 + $0x8] sm:$0xff]
      %v806 = vld [vmem:[#allocation2 + $0x10] sm:$0xff]
      %v807 = vld [vmem:[#allocation2 + $0x18] sm:$0xff]
      %v808 = vpack.c.bf16 %v806, %v804
      %v809 = vpack.c.bf16 %v807, %v805
      %v812 = vunpack.c.l.b16 %v808
      %v813 = vunpack.c.l.b16 %v809
      %v814 = vunpack.c.h.b16 %v808
      %v815 = vunpack.c.h.b16 %v809
      %v816 = vpack.c.b16 %v813, %v812
      %v817 = vpack.c.b16 %v815, %v814
      %820 = vst [vmem:[#allocation8] sm:$0xff] %v816
      %821 = vst [vmem:[#allocation8 + $0x8] sm:$0xff] %v817
    $region25: #{tpu_custom_call.1} parent=1 // pred_fallthru
      _
    // Predicated region
    $region26: #{tpu_custom_call.1} parent=1 // pred_check
      _
    $region27: #{tpu_custom_call.1} parent=1 // pred_check_branch
      %823 = sbr.rel (0) target = $region29
    $region28: #{tpu_custom_call.1} parent=1 // pred_region
      %s825 = ssub.s32 256, 256
      %826 = vsyncadd [#allocation5], %s825
      %s827 = sshll.u32 [#allocation8], 4
      %s828 = int_to_ptr.vmem [resolvable:$true] %s827
      %833 = dma.vmem_to_hbm [thread:$0]  %s828, 256, %s2, [#allocation5], 128, 128, 8
    $region29: #{tpu_custom_call.1} parent=1 // pred_fallthru
      _
    // Predicated region
    $region30: #{tpu_custom_call.1} parent=1 // pred_check
      _
    $region31: #{tpu_custom_call.1} parent=1 // pred_check_branch
      %835 = sbr.rel (0) target = $region33
    $region32: #{tpu_custom_call.1} parent=1 // pred_region
      %836 = dma.done [#allocation5], 256
    $region33: #{tpu_custom_call.1} parent=1 // pred_fallthru
      _
    %837 = vsyncpa [#allocation4], 1
    %838 = vsyncpa [#allocation7], 1
    %839 = vsyncpa [#allocation5], 1

</llo_original>
